<compile_context>
chip_gen: v7x
topology: tpu7x:2x2x1
jax: 0.10.0
libtpu: 0.0.40
codegen_flags: <defaults>
</compile_context>

<pallas_src>
import jax
import jax.numpy as jnp
from jax.experimental import pallas as pl
from jax.experimental.pallas import tpu as pltpu


def _graspable_kernel(x_ref, w_ref, b_ref, obj_ref, grasp_ref):
    # x_ref:     (1, C, TN)  compute dtype (bf16 by default)
    # w_ref:     (3, C)      compute dtype
    # b_ref:     (3,)        f32 scalars in SMEM
    # obj_ref:   (1, 2, TN)  f32
    # grasp_ref: (1, 1, TN)  f32
    x = x_ref[0]                      # (C, TN)
    w = w_ref[...]                    # (3, C)
    # Contraction over channels on the MXU, f32 accumulation.
    score = jnp.dot(w, x, preferred_element_type=jnp.float32)   # (3, TN) f32
    # Bias folded as three scalar adds (f32 epilogue), outputs written
    # directly into the two result buffers (no post-call slicing).
    obj_ref[0, 0:1, :] = (score[0:1, :] + b_ref[0]).astype(obj_ref.dtype)
    obj_ref[0, 1:2, :] = (score[1:2, :] + b_ref[1]).astype(obj_ref.dtype)
    grasp_ref[0] = (score[2:3, :] + b_ref[2]).astype(grasp_ref.dtype)


def graspable_net_forward(seed_features, weight, bias, end_points=None, *,
                          tile_n=2048, compute_dtype=jnp.bfloat16):
    """Pallas implementation of GraspableNet.forward.

    seed_features: (B, C, N) float (NCW, same layout as PyTorch Conv1d input)
    weight:        (3, C)    float (Conv1d weight squeezed over kernel dim)
    bias:          (3,)      float
    Returns end_points with 'objectness_score' (B,2,N) f32 and
    'graspness_score' (B,N) f32.
    """
    if end_points is None:
        end_points = {}
    B, C, N = seed_features.shape

    # bf16 input stream halves HBM traffic; MXU accumulates in f32.
    x = seed_features.astype(compute_dtype)
    w = weight.astype(compute_dtype)
    b = bias.astype(jnp.float32)

    tn = min(tile_n, N)               # lane tile (multiple of 128, or full N)
    n_tiles = pl.cdiv(N, tn)

    in_bytes = B * C * N * x.dtype.itemsize + 3 * C * w.dtype.itemsize + 3 * 4
    out_bytes = B * 3 * N * 4
    cost = pl.CostEstimate(flops=2 * B * 3 * C * N,
                           transcendentals=0,
                           bytes_accessed=in_bytes + out_bytes)

    obj, grasp = pl.pallas_call(
        _graspable_kernel,
        out_shape=(jax.ShapeDtypeStruct((B, 2, N), jnp.float32),
                   jax.ShapeDtypeStruct((B, 1, N), jnp.float32)),
        grid_spec=pltpu.PrefetchScalarGridSpec(
            num_scalar_prefetch=0,
            grid=(B, n_tiles),
            in_specs=[
                # per-(batch, lane-tile) input slab
                pl.BlockSpec((1, C, tn), lambda bi, ni: (bi, 0, ni)),
                # tiny weight: constant index map -> stays VMEM-resident
                pl.BlockSpec((3, C), lambda bi, ni: (0, 0)),
                # bias scalars in SMEM (no degenerate vector tile)
                pl.BlockSpec(memory_space=pltpu.MemorySpace.SMEM),
            ],
            out_specs=[
                pl.BlockSpec((1, 2, tn), lambda bi, ni: (bi, 0, ni)),
                pl.BlockSpec((1, 1, tn), lambda bi, ni: (bi, 0, ni)),
            ],
        ),
        compiler_params=pltpu.CompilerParams(
            dimension_semantics=("parallel", "parallel")),
        cost_estimate=cost,
    )(x, w, b)

    end_points['objectness_score'] = obj            # (B, 2, N)
    end_points['graspness_score'] = grasp[:, 0]     # (B, N) - free squeeze
    return end_points


if __name__ == "__main__":
    # Small shapes: batch=2, seed_feature_dim=32, num_points=512
    B, C, N = 2, 32, 512
    key = jax.random.PRNGKey(0)
    kx, kw, kb = jax.random.split(key, 3)

    seed_features = jax.random.normal(kx, (B, C, N), dtype=jnp.float32)
    # Conv1d(in_dim, 3, 1): weight (3, C, 1) -> (3, C)
    weight = jax.random.normal(kw, (3, C), dtype=jnp.float32) * 0.05
    bias = jax.random.normal(kb, (3,), dtype=jnp.float32) * 0.05

    # tile_n=256 exercises the N grid axis (2 lane-tiles per batch element).
    end_points = graspable_net_forward(seed_features, weight, bias, tile_n=256)
    obj = jax.block_until_ready(end_points['objectness_score'])
    grasp = jax.block_until_ready(end_points['graspness_score'])

    # Reference: bf16-quantized inputs with f32 accumulation (matches the
    # MXU bf16-in / f32-acc path used by the kernel).
    wq = weight.astype(jnp.bfloat16).astype(jnp.float32)
    xq = seed_features.astype(jnp.bfloat16).astype(jnp.float32)
    ref = jnp.einsum('oc,bcn->bon', wq, xq) + bias[None, :, None]

    assert obj.shape == (B, 2, N)
    assert grasp.shape == (B, N)
    assert jnp.allclose(obj, ref[:, :2], atol=1e-3, rtol=1e-3)
    assert jnp.allclose(grasp, ref[:, 2], atol=1e-3, rtol=1e-3)

    print("KERNEL_OK")
</pallas_src>

<mosaic_0001>
module attributes {stable_mosaic.version = 11 : i64} {
  func.func @_graspable_kernel(%arg0: i32, %arg1: i32, %arg2: memref<1x32x256xbf16, #tpu.memory_space<vmem>>, %arg3: memref<3x32xbf16, #tpu.memory_space<vmem>>, %arg4: memref<3xf32, #tpu.memory_space<smem>>, %arg5: memref<1x2x256xf32, #tpu.memory_space<vmem>>, %arg6: memref<1x1x256xf32, #tpu.memory_space<vmem>>) attributes {dimension_semantics = [#tpu.dimension_semantics<parallel>, #tpu.dimension_semantics<parallel>], iteration_bounds = array<i64: 2, 2>, scalar_prefetch = 0 : i64, scratch_operands = 0 : i64, tpu.core_type = #tpu.core_type<tc>, window_params = [{transform_indices = @transform_0, window_bounds = array<i64: 1, 32, 256>}, {pipeline_mode = #tpu.pipeline_mode<synchronous>, transform_indices = @transform_1, window_bounds = array<i64: 3, 32>}, {transform_indices = @transform_2, window_bounds = array<i64: 3>}, {transform_indices = @transform_3, window_bounds = array<i64: 1, 2, 256>}, {transform_indices = @transform_4, window_bounds = array<i64: 1, 1, 256>}]} {
    %c0 = arith.constant 0 : index
    %c0_0 = arith.constant 0 : index
    %c0_1 = arith.constant 0 : index
    %0 = vector.load %arg2[%c0, %c0_0, %c0_1] : memref<1x32x256xbf16, #tpu.memory_space<vmem>>, vector<1x32x256xbf16>
    %1 = vector.shape_cast %0 : vector<1x32x256xbf16> to vector<32x256xbf16>
    %c0_2 = arith.constant 0 : index
    %c0_3 = arith.constant 0 : index
    %2 = vector.load %arg3[%c0_2, %c0_3] : memref<3x32xbf16, #tpu.memory_space<vmem>>, vector<3x32xbf16>
    %cst = arith.constant dense<0.000000e+00> : vector<3x256xf32>
    %3 = tpu.matmul %2, %1, %cst {dimension_numbers = #tpu.dot_dimension_numbers<[1], [0], [0], [1], [0, 0, 1, 1], [], []>} : vector<3x32xbf16>, vector<32x256xbf16>, vector<3x256xf32> -> vector<3x256xf32>
    %4 = vector.extract_strided_slice %3 {offsets = [0, 0], sizes = [1, 256], strides = [1, 1]} : vector<3x256xf32> to vector<1x256xf32>
    %c0_4 = arith.constant 0 : index
    %5 = memref.load %arg4[%c0_4] : memref<3xf32, #tpu.memory_space<smem>>
    %6 = vector.broadcast %5 : f32 to vector<1x256xf32>
    %7 = arith.addf %4, %6 : vector<1x256xf32>
    %c0_5 = arith.constant 0 : index
    %c0_6 = arith.constant 0 : index
    %c0_7 = arith.constant 0 : index
    %8 = vector.load %arg5[%c0_5, %c0_6, %c0_7] : memref<1x2x256xf32, #tpu.memory_space<vmem>>, vector<1x1x256xf32>
    %9 = vector.shape_cast %8 : vector<1x1x256xf32> to vector<1x256xf32>
    %10 = vector.shape_cast %7 : vector<1x256xf32> to vector<1x1x256xf32>
    tpu.vector_store %arg5[%c0_5, %c0_6, %c0_7], %10 {strides = array<i32>} : memref<1x2x256xf32, #tpu.memory_space<vmem>>, vector<1x1x256xf32>,
    %11 = vector.extract_strided_slice %3 {offsets = [1, 0], sizes = [1, 256], strides = [1, 1]} : vector<3x256xf32> to vector<1x256xf32>
    %c1 = arith.constant 1 : index
    %12 = memref.load %arg4[%c1] : memref<3xf32, #tpu.memory_space<smem>>
    %13 = vector.broadcast %12 : f32 to vector<1x256xf32>
    %14 = arith.addf %11, %13 : vector<1x256xf32>
    %c0_8 = arith.constant 0 : index
    %c1_9 = arith.constant 1 : index
    %c0_10 = arith.constant 0 : index
    %15 = vector.load %arg5[%c0_8, %c1_9, %c0_10] : memref<1x2x256xf32, #tpu.memory_space<vmem>>, vector<1x1x256xf32>
    %16 = vector.shape_cast %15 : vector<1x1x256xf32> to vector<1x256xf32>
    %17 = vector.shape_cast %14 : vector<1x256xf32> to vector<1x1x256xf32>
    tpu.vector_store %arg5[%c0_8, %c1_9, %c0_10], %17 {strides = array<i32>} : memref<1x2x256xf32, #tpu.memory_space<vmem>>, vector<1x1x256xf32>,
    %18 = vector.extract_strided_slice %3 {offsets = [2, 0], sizes = [1, 256], strides = [1, 1]} : vector<3x256xf32> to vector<1x256xf32>
    %c2 = arith.constant 2 : index
    %19 = memref.load %arg4[%c2] : memref<3xf32, #tpu.memory_space<smem>>
    %20 = vector.broadcast %19 : f32 to vector<1x256xf32>
    %21 = arith.addf %18, %20 : vector<1x256xf32>
    %c0_11 = arith.constant 0 : index
    %c0_12 = arith.constant 0 : index
    %c0_13 = arith.constant 0 : index
    %22 = vector.load %arg6[%c0_11, %c0_12, %c0_13] : memref<1x1x256xf32, #tpu.memory_space<vmem>>, vector<1x1x256xf32>
    %23 = vector.shape_cast %22 : vector<1x1x256xf32> to vector<1x256xf32>
    %24 = vector.shape_cast %21 : vector<1x256xf32> to vector<1x1x256xf32>
    tpu.vector_store %arg6[%c0_11, %c0_12, %c0_13], %24 {strides = array<i32>} : memref<1x1x256xf32, #tpu.memory_space<vmem>>, vector<1x1x256xf32>,
    return
  }
  func.func @transform_0(%arg0: i32, %arg1: i32) -> (i32, i32, i32) {
    %c0_i32 = arith.constant 0 : i32
    %c0_i32_0 = arith.constant 0 : i32
    return %arg0, %c0_i32, %arg1 : i32, i32, i32
  }
  func.func @transform_1(%arg0: i32, %arg1: i32) -> (i32, i32) {
    %c0_i32 = arith.constant 0 : i32
    %c0_i32_0 = arith.constant 0 : i32
    %c0_i32_1 = arith.constant 0 : i32
    return %c0_i32, %c0_i32_0 : i32, i32
  }
  func.func @transform_2(%arg0: i32, %arg1: i32) -> i32 {
    %c0_i32 = arith.constant 0 : i32
    %c0_i32_0 = arith.constant 0 : i32
    return %c0_i32 : i32
  }
  func.func @transform_3(%arg0: i32, %arg1: i32) -> (i32, i32, i32) {
    %c0_i32 = arith.constant 0 : i32
    %c0_i32_0 = arith.constant 0 : i32
    return %arg0, %c0_i32, %arg1 : i32, i32, i32
  }
  func.func @transform_4(%arg0: i32, %arg1: i32) -> (i32, i32, i32) {
    %c0_i32 = arith.constant 0 : i32
    %c0_i32_0 = arith.constant 0 : i32
    return %arg0, %c0_i32, %arg1 : i32, i32, i32
  }
}

</mosaic_0001>

<llo_original>
// kernel: tpu_custom_call.1
$region0: #{tpu_custom_call.1}
  #allocation0 [shape = 'u32[]', space=smem, size = 0x4, offset = 0x4, fixed_abs, tag = 'smem constant byte address 0x4 - core index']
  #allocation1 [shape = 'u32[144,128]{1,0:T(1,128)}', space=vmem, size = 0x12000, scoped, tag = 'internal scratch']
  %s0 = inlined_call_operand.hbm [shape: bf16[2,32,512], index: 0, kind: input, shape index: {}]
  %s1 = inlined_call_operand.vmem [shape: bf16[3,32], index: 1, kind: input, shape index: {}]
  %s2 = inlined_call_operand.vmem [shape: f32[3], index: 2, kind: input, shape index: {}]
  %s3 = inlined_call_operand.hbm [shape: f32[2,2,512], index: 3, kind: output, shape index: {0}]
  %s4 = inlined_call_operand.hbm [shape: f32[2,1,512], index: 4, kind: output, shape index: {1}]
  %5 = xla_tuple %s3, %s4
  %s6 = sld [smem:[#allocation0]]
  $region61: #{tpu_custom_call.1} parent=0
    _
  %s8 = ssub.s32 1, %s6
  %s9 = scalar_select 0, %s8, %s6
  $region1: #{tpu_custom_call.1} parent=0
    #allocation2 [shape = 'u8[32768]{0}', space=vmem, size = 0x8000, scoped, tag = 'input window, operand 0']
    #allocation3 [shape = 's32[2]{0}', space=sflag, size = 0x8, scoped, tag = 'scoped memory for tpu_custom_call.1']
    #allocation4 [shape = 's32[2]{0}', space=sflag, size = 0x8, scoped, tag = 'scoped memory for tpu_custom_call.1']
    #allocation5 [shape = 's32[2]{0}', space=sflag, size = 0x8, scoped, tag = 'scoped memory for tpu_custom_call.1']
    #allocation6 [shape = 'u8[512]{0}', space=smem, size = 0x200, scoped, tag = 'input window, operand 2, single buffered']
    #allocation7 [shape = 'u8[4096]{0}', space=vmem, size = 0x1000, scoped, tag = 'output window, operand 0']
    #allocation8 [shape = 'u8[2048]{0}', space=vmem, size = 0x800, scoped, tag = 'output window, operand 1']
    #allocation9 [shape = 's32[2]{0}', space=sflag, size = 0x8, scoped, tag = 'scoped memory for tpu_custom_call.1']
    %10 = vsyncpa [#allocation3], 0
    %s11 = scalar_lea.sflag [#allocation3], 1
    %12 = vsyncpa %s11, 0
    %13 = vsyncpa [#allocation5], 0
    %14 = vsyncpa [#allocation4], 0
    %s15 = scalar_lea.sflag [#allocation4], 1
    %16 = vsyncpa %s15, 0
    %17 = vsyncpa [#allocation9], 0
    %s18 = scalar_lea.sflag [#allocation9], 1
    %19 = vsyncpa %s18, 0
    loop: start=0, step=1, limit=6
    $region2: #{tpu_custom_call.1} parent=1 // loop_pre_header
      _
    $region3: #{tpu_custom_call.1} parent=1 // loop_header
      %s21 = sphi 0, %s25
      %p22 = scmp.ge.s32.totalorder %s21, 6
      %s28 = sphi 0, %s40
      %s29 = sphi 0, %s36
      %s30 = sphi 0, %s28
      %s31 = sphi 0, %s29
      %s32 = sphi 0, %s30
      %s33 = sphi 0, %s31
      %s45 = sphi 0, %s47
      %s48 = sphi 0, %s45
      %s49 = sphi 0, %s48
      %s65 = sphi 0, %s49
      %s69 = sphi 0, %s69
      %s71 = sphi 0, %s69
      %s72 = sphi 0, %s71
      %s86 = sphi 0, %s72
      %s90 = sphi 0, %s90
      %s92 = sphi 0, %s90
      %s93 = sphi 0, %s92
      %s107 = sphi 0, %s93
      %s115 = sphi 0, %s117
      %s118 = sphi 0, %s115
      %s119 = sphi 0, %s118
      %s135 = sphi 0, %s119
      %s143 = sphi 0, %s145
      %s146 = sphi 0, %s143
      %s147 = sphi 0, %s146
      %s163 = sphi 0, %s147
    $region4: #{tpu_custom_call.1} parent=1 // loop_header_branch
      %24 = sbr.rel (%p22) target = $region8
    $region5: #{tpu_custom_call.1} parent=1 // loop_body
      %s26 = ssub.s32 %s21, 1
      %s27 = ssub.s32 %s21, 2
      %s34 = sadd.s32 1, %s29
      %p35 = scmp.ge.s32.totalorder %s34, 2
      %s36 = scalar_select %p35, 0, %s34
      %s37 = sadd.s32 1, %s28
      %s38 = scalar_select %p35, %s37, %s28
      %p39 = scmp.ge.s32.totalorder %s38, 2
      %s40 = scalar_select %p39, 0, %s38
      %s41 = ssub.s32 %s28, %s40
      %s42 = ssub.s32 %s29, %s36
      %s43 = sor.u32 %s41, %s42
      %p44 = scmp.eq.s32.totalorder %s43, 0
      %s46 = sadd.s32 %s45, 1
      %s47 = scalar_select %p44, %s45, %s46
      %p50 = pneg %p44
      %p51 = scmp.eq.s32.totalorder %s21, 3
      %p52 = por %p50, %p51
      %p53 = scmp.ne.s32.totalorder %s45, %s48
      %p54 = scmp.eq.s32.totalorder %s21, 0
      %p55 = por %p53, %p54
      %p56 = scmp.ne.s32.totalorder %s45, %s48
      %p57 = scmp.eq.s32.totalorder %s26, 3
      %p58 = por %p56, %p57
      %p59 = scmp.ne.s32.totalorder %s48, %s49
      %p60 = scmp.eq.s32.totalorder %s26, 0
      %p61 = por %p59, %p60
      %p62 = scmp.ne.s32.totalorder %s48, %s49
      %p63 = scmp.eq.s32.totalorder %s27, 3
      %p64 = por %p62, %p63
      %p66 = scmp.ne.s32.totalorder %s49, %s65
      %p67 = scmp.eq.s32.totalorder %s27, 0
      %p68 = por %p66, %p67
      %s70 = sadd.s32 %s69, 1
      %p73 = scmp.eq.s32.totalorder %s21, 3
      %p74 = scmp.ne.s32.totalorder %s69, %s71
      %p75 = scmp.eq.s32.totalorder %s21, 0
      %p76 = por %p74, %p75
      %p77 = scmp.ne.s32.totalorder %s69, %s71
      %p78 = scmp.eq.s32.totalorder %s26, 3
      %p79 = por %p77, %p78
      %p80 = scmp.ne.s32.totalorder %s71, %s72
      %p81 = scmp.eq.s32.totalorder %s26, 0
      %p82 = por %p80, %p81
      %p83 = scmp.ne.s32.totalorder %s71, %s72
      %p84 = scmp.eq.s32.totalorder %s27, 3
      %p85 = por %p83, %p84
      %p87 = scmp.ne.s32.totalorder %s72, %s86
      %p88 = scmp.eq.s32.totalorder %s27, 0
      %p89 = por %p87, %p88
      %s91 = sadd.s32 %s90, 1
      %p94 = scmp.eq.s32.totalorder %s21, 3
      %p95 = scmp.ne.s32.totalorder %s90, %s92
      %p96 = scmp.eq.s32.totalorder %s21, 0
      %p97 = por %p95, %p96
      %p98 = scmp.ne.s32.totalorder %s90, %s92
      %p99 = scmp.eq.s32.totalorder %s26, 3
      %p100 = por %p98, %p99
      %p101 = scmp.ne.s32.totalorder %s92, %s93
      %p102 = scmp.eq.s32.totalorder %s26, 0
      %p103 = por %p101, %p102
      %p104 = scmp.ne.s32.totalorder %s92, %s93
      %p105 = scmp.eq.s32.totalorder %s27, 3
      %p106 = por %p104, %p105
      %p108 = scmp.ne.s32.totalorder %s93, %s107
      %p109 = scmp.eq.s32.totalorder %s27, 0
      %p110 = por %p108, %p109
      %s111 = ssub.s32 %s28, %s40
      %s112 = ssub.s32 %s29, %s36
      %s113 = sor.u32 %s111, %s112
      %p114 = scmp.eq.s32.totalorder %s113, 0
      %s116 = sadd.s32 %s115, 1
      %s117 = scalar_select %p114, %s115, %s116
      %p120 = pneg %p114
      %p121 = scmp.eq.s32.totalorder %s21, 3
      %p122 = por %p120, %p121
      %p123 = scmp.ne.s32.totalorder %s115, %s118
      %p124 = scmp.eq.s32.totalorder %s21, 0
      %p125 = por %p123, %p124
      %p126 = scmp.ne.s32.totalorder %s115, %s118
      %p127 = scmp.eq.s32.totalorder %s26, 3
      %p128 = por %p126, %p127
      %p129 = scmp.ne.s32.totalorder %s118, %s119
      %p130 = scmp.eq.s32.totalorder %s26, 0
      %p131 = por %p129, %p130
      %p132 = scmp.ne.s32.totalorder %s118, %s119
      %p133 = scmp.eq.s32.totalorder %s27, 3
      %p134 = por %p132, %p133
      %p136 = scmp.ne.s32.totalorder %s119, %s135
      %p137 = scmp.eq.s32.totalorder %s27, 0
      %p138 = por %p136, %p137
      %s139 = ssub.s32 %s28, %s40
      %s140 = ssub.s32 %s29, %s36
      %s141 = sor.u32 %s139, %s140
      %p142 = scmp.eq.s32.totalorder %s141, 0
      %s144 = sadd.s32 %s143, 1
      %s145 = scalar_select %p142, %s143, %s144
      %p148 = pneg %p142
      %p149 = scmp.eq.s32.totalorder %s21, 3
      %p150 = por %p148, %p149
      %p151 = scmp.ne.s32.totalorder %s143, %s146
      %p152 = scmp.eq.s32.totalorder %s21, 0
      %p153 = por %p151, %p152
      %p154 = scmp.ne.s32.totalorder %s143, %s146
      %p155 = scmp.eq.s32.totalorder %s26, 3
      %p156 = por %p154, %p155
      %p157 = scmp.ne.s32.totalorder %s146, %s147
      %p158 = scmp.eq.s32.totalorder %s26, 0
      %p159 = por %p157, %p158
      %p160 = scmp.ne.s32.totalorder %s146, %s147
      %p161 = scmp.eq.s32.totalorder %s27, 3
      %p162 = por %p160, %p161
      %p164 = scmp.ne.s32.totalorder %s147, %s163
      %p165 = scmp.eq.s32.totalorder %s27, 0
      %p166 = por %p164, %p165
      %p167 = scmp.le.s32.totalorder 1, %s21
      %p168 = scmp.lt.s32.totalorder %s21, 5
      %p169 = pnand %p167, %p168
      %p170 = pneg %p169
      // Predicated region
      $region9: #{tpu_custom_call.1} parent=5 // pred_check
        _
      $region10: #{tpu_custom_call.1} parent=5 // pred_check_branch
        %172 = sbr.rel (%p169) target = $region12
      $region11: #{tpu_custom_call.1} parent=5 // pred_region
        %s173 = ssub.s32 %s21, 1
        // Predicated region
        $region13: #{tpu_custom_call.1} parent=11 // pred_check
          %p174 = pneg %p82
        $region14: #{tpu_custom_call.1} parent=11 // pred_check_branch
          %176 = sbr.rel (%p174) target = $region16
        $region15: #{tpu_custom_call.1} parent=11 // pred_region
          _
        $region16: #{tpu_custom_call.1} parent=11 // pred_fallthru
          _
        // Predicated region
        $region17: #{tpu_custom_call.1} parent=11 // pred_check
          %p177 = pneg %p103
        $region18: #{tpu_custom_call.1} parent=11 // pred_check_branch
          %179 = sbr.rel (%p177) target = $region20
        $region19: #{tpu_custom_call.1} parent=11 // pred_region
          %s181 = ssub.s32 16, 16
          %182 = vsyncadd [#allocation5], %s181
          %s184 = sshll.u32 %s2, 4
          %s185 = int_to_ptr.vmem [resolvable:$true] %s184
          %187 = dma.vmem_to_smem %s185, 16, [#allocation6], [#allocation5]
        $region20: #{tpu_custom_call.1} parent=11 // pred_fallthru
          _
      $region12: #{tpu_custom_call.1} parent=5 // pred_fallthru
        _
      %p188 = scmp.lt.s32.totalorder %s21, 4
      // Predicated region
      $region21: #{tpu_custom_call.1} parent=5 // pred_check
        %p189 = pneg %p188
      $region22: #{tpu_custom_call.1} parent=5 // pred_check_branch
        %191 = sbr.rel (%p189) target = $region24
      $region23: #{tpu_custom_call.1} parent=5 // pred_region
        // Predicated region
        $region25: #{tpu_custom_call.1} parent=23 // pred_check
          %p192 = pneg %p55
        $region26: #{tpu_custom_call.1} parent=23 // pred_check_branch
          %194 = sbr.rel (%p192) target = $region28
        $region27: #{tpu_custom_call.1} parent=23 // pred_region
          %s195 = sand.u32 %s45, 1
          %s196 = scalar_lea.sflag [#allocation3], %s195
          %s197 = sand.u32 %s45, 1
          %s198 = smul.addr %s197, 32
          %s199 = scalar_lea.vmem [#allocation2], %s198
          %s200 = smul.u32 2, %s29
          %s202 = ssub.s32 512, 512
          %203 = vsyncadd %s196, %s202
          %s204 = smul.addr %s28, 16
          %s205 = sadd.s32 %s200, %s204
          %s206 = smul.addr %s205, 64
          %s207 = scalar_lea.hbm %s0, %s206
          %s208 = sshll.u32 %s199, 4
          %s209 = int_to_ptr.vmem [resolvable:$true] %s208
          %214 = dma.hbm_to_vmem [thread:$0]  %s207, 512, %s209, %s196, 256, 128, 8
        $region28: #{tpu_custom_call.1} parent=23 // pred_fallthru
          _
      $region24: #{tpu_custom_call.1} parent=5 // pred_fallthru
        _
      %p215 = scmp.le.s32.totalorder 1, %s21
      %p216 = scmp.lt.s32.totalorder %s21, 5
      %p217 = pnand %p215, %p216
      %p218 = pneg %p217
      // Predicated region
      $region29: #{tpu_custom_call.1} parent=5 // pred_check
        _
      $region30: #{tpu_custom_call.1} parent=5 // pred_check_branch
        %220 = sbr.rel (%p217) target = $region32
      $region31: #{tpu_custom_call.1} parent=5 // pred_region
        %s221 = ssub.s32 %s21, 1
        %s222 = sand.u32 %s48, 1
        %s223 = scalar_lea.sflag [#allocation3], %s222
        %s224 = sand.u32 %s48, 1
        %s225 = smul.addr %s224, 32
        %s226 = scalar_lea.vmem [#allocation2], %s225
        // Predicated region
        $region33: #{tpu_custom_call.1} parent=31 // pred_check
          %p227 = pneg %p61
        $region34: #{tpu_custom_call.1} parent=31 // pred_check_branch
          %229 = sbr.rel (%p227) target = $region36
        $region35: #{tpu_custom_call.1} parent=31 // pred_region
          %230 = dma.done %s223, 512
        $region36: #{tpu_custom_call.1} parent=31 // pred_fallthru
          _
        // Predicated region
        $region37: #{tpu_custom_call.1} parent=31 // pred_check
          %p231 = pneg %p103
        $region38: #{tpu_custom_call.1} parent=31 // pred_check_branch
          %233 = sbr.rel (%p231) target = $region40
        $region39: #{tpu_custom_call.1} parent=31 // pred_region
          %234 = dma.done [#allocation5], 16
        $region40: #{tpu_custom_call.1} parent=31 // pred_fallthru
          _
        %235 = sfence
        %s236 = sand.u32 %s48, 1
        %s237 = scalar_lea.sflag [#allocation3], %s236
        %s238 = sand.u32 %s48, 1
        %s239 = smul.addr %s238, 32
        %s240 = scalar_lea.vmem [#allocation2], %s239
        %p241 = pneg %p61
        %p242 = pneg %p58
        %p243 = pneg %p82
        %p244 = pneg %p79
        %p245 = pneg %p103
        %p246 = pneg %p100
        %p247 = pneg %p131
        %p248 = pneg %p128
        %s249 = sand.u32 %s118, 1
        %s250 = scalar_lea.sflag [#allocation4], %s249
        %s251 = sand.u32 %s118, 1
        %s252 = smul.addr %s251, 4
        %s253 = scalar_lea.vmem [#allocation7], %s252
        %p254 = pneg %p159
        %p255 = pneg %p156
        %s256 = sand.u32 %s146, 1
        %s257 = scalar_lea.sflag [#allocation9], %s256
        %s258 = sand.u32 %s146, 1
        %s259 = smul.addr %s258, 2
        %s260 = scalar_lea.vmem [#allocation8], %s259
        %s261 = smul.u32 2, %s31
        %s262 = smul.u32 2, %s31
        %s263 = smul.u32 2, %s31
        %v265 = vld [vmem:[%s226] sm:$0xff]
        %v266 = vld [vmem:[%s226 + $0x8] sm:$0xff]
        %v267 = vld [vmem:[%s226 + $0x10] sm:$0xff]
        %v268 = vld [vmem:[%s226 + $0x18] sm:$0xff]
        %v269 = vld [vmem:[%s1] sm:$0x3]
        %v274 = vunpack.c.l.b16 %v265
        %v275 = vunpack.c.h.b16 %v265
        %v276 = vunpack.c.l.b16 %v266
        %v277 = vunpack.c.h.b16 %v266
        %v278 = vunpack.c.l.b16 %v267
        %v279 = vunpack.c.h.b16 %v267
        %v280 = vunpack.c.l.b16 %v268
        %v281 = vunpack.c.h.b16 %v268
        %v282 = vpack.c.b16 %v276, %v274
        %v283 = vpack.c.b16 %v277, %v275
        %v284 = vpack.c.b16 %v280, %v278
        %v285 = vpack.c.b16 %v281, %v279
        %vm290 = vcmask 261120
        %v292 = vsel %vm290, %v269, 0
        %294 = vmatprep.subr.bf16.mxu0 %v283
        %295 = vmatpush1.bf16.msra.mxu0 %v282
        %296 = vmatprep.subr.bf16.mxu0 %v285
        %297 = vmatpush1.bf16.msra.mxu0 %v284
        %298 = vmatprep.subr.bf16.mxu0 0
        %299 = vmatpush1.bf16.msra.mxu0 0
        %300 = vmatprep.subr.bf16.mxu0 0
        %301 = vmatpush1.bf16.msra.mxu0 0
        %302 = vmatprep.subr.bf16.mxu0 0
        %303 = vmatpush1.bf16.msra.mxu0 0
        %304 = vmatprep.subr.bf16.mxu0 0
        %305 = vmatpush1.bf16.msra.mxu0 0
        %306 = vmatprep.subr.bf16.mxu0 0
        %307 = vmatpush1.bf16.msra.mxu0 0
        %308 = vmatprep.subr.bf16.mxu0 0
        %309 = vmatpush1.bf16.msra.mxu0 0
        %310 = vmatprep.subr.bf16.mxu0 0
        %311 = vmatpush1.bf16.msra.mxu0 0
        %312 = vmatprep.subr.bf16.mxu0 0
        %313 = vmatpush1.bf16.msra.mxu0 0
        %314 = vmatprep.subr.bf16.mxu0 0
        %315 = vmatpush1.bf16.msra.mxu0 0
        %316 = vmatprep.subr.bf16.mxu0 0
        %317 = vmatpush1.bf16.msra.mxu0 0
        %318 = vmatprep.subr.bf16.mxu0 0
        %319 = vmatpush1.bf16.msra.mxu0 0
        %320 = vmatprep.subr.bf16.mxu0 0
        %321 = vmatpush1.bf16.msra.mxu0 0
        %322 = vmatprep.subr.bf16.mxu0 0
        %323 = vmatpush1.bf16.msra.mxu0 0
        %324 = vmatprep.subr.bf16.mxu0 0
        %325 = vmatpush1.bf16.msra.mxu0 0
        %326 = vmatprep.mubr.bf16.mxu0 0
        %327 = vmatmul.mubr.bf16.gmra.mrb[0].mxu0 %v292
        %v328 = vpop.f32.mrb[0].mxu0
        %v329 = vadd.f32 0.0, %v328
        %v330 = vpop.f32.mrb[0].mxu0
        %v331 = vadd.f32 0.0, %v330
        %v332 = vpop.f32.mrb[0].mxu0
        %v333 = vpop.f32.mrb[0].mxu0
        %334 = vdwg.mxu0
        %s335 = sld [smem:[#allocation6]]
        %v336 = vstv %s335
        %v337 = vadd.f32 %v329, %v336
        %v338 = vadd.f32 %v331, %v336
        %v341 = vcombine.low %v337, %v338
        %v343 = vunpack.c.l.s4 1966171168
        %v344 = vunpack.c.0.s8 %v343
        %v345 = vlaneseq
        %v346 = vshrl.u32 %v345, 7
        %v347 = vsub.s32 %v344, %v346
        %v348 = vrot.slane %v341, %v347
        %v350 = vunpack.c.l.s4 1966171168
        %v351 = vunpack.c.0.s8 %v350
        %v352 = vlaneseq
        %v353 = vshrl.u32 %v352, 7
        %v354 = vsub.s32 %v351, %v353
        %v355 = vrot.slane %v348, %v354
        %v357 = vlaneseq
        %vm358 = vcmp.ge.s32.totalorder %v357, 0
        %vm359 = vcmp.lt.s32.totalorder %v357, 256
        %vm360 = vmand %vm358, %vm359
        %361 = vst.msk [vmem:[%s253] ss:$2 sm:$0x3] %vm360, %v355
        %s362 = sld [smem:[#allocation6 + $0x1]]
        %v363 = vstv %s362
        %v364 = vadd.f32 %v329, %v363
        %v365 = vadd.f32 %v331, %v363
        %v368 = vcombine.low %v364, %v365
        %v370 = vunpack.c.l.s4 1966171168
        %v371 = vunpack.c.0.s8 %v370
        %v372 = vlaneseq
        %v373 = vshrl.u32 %v372, 7
        %v374 = vsub.s32 %v371, %v373
        %v375 = vrot.slane %v368, %v374
        %v376 = vcombine.high %v375, %v375
        %v378 = vunpack.c.l.s4 1966171168
        %v379 = vunpack.c.0.s8 %v378
        %v380 = vlaneseq
        %v381 = vshrl.u32 %v380, 7
        %v382 = vsub.s32 %v379, %v381
        %v383 = vrot.slane %v376, %v382
        %s385 = scalar_lea.vmem %s253, 1 [#allocation7]
        %386 = vst.msk [vmem:[%s385] ss:$2 sm:$0x3] %vm360, %v383
        %s387 = sld [smem:[#allocation6 + $0x2]]
        %v388 = vstv %s387
        %v389 = vadd.f32 %v329, %v388
        %v390 = vadd.f32 %v331, %v388
        %v393 = vcombine.low %v389, %v390
        %v395 = vunpack.c.l.s4 1966171168
        %v396 = vunpack.c.0.s8 %v395
        %v397 = vlaneseq
        %v398 = vshrl.u32 %v397, 7
        %v399 = vsub.s32 %v396, %v398
        %v400 = vrot.slane %v393, %v399
        %v402 = vunpack.c.l.s4 1966171168
        %v403 = vunpack.c.0.s8 %v402
        %v404 = vlaneseq
        %v405 = vshrl.u32 %v404, 7
        %v406 = vsub.s32 %v403, %v405
        %v407 = vrot.slane %v400, %v406
        %v408 = vcombine.high %v407, %v407
        %410 = vst.msk [vmem:[%s260] sm:$0x3] %vm360, %v408
        %s411 = sand.u32 %s118, 1
        %s412 = scalar_lea.sflag [#allocation4], %s411
        %s413 = sand.u32 %s118, 1
        %s414 = smul.addr %s413, 4
        %s415 = scalar_lea.vmem [#allocation7], %s414
        %s416 = sand.u32 %s146, 1
        %s417 = scalar_lea.sflag [#allocation9], %s416
        %s418 = sand.u32 %s146, 1
        %s419 = smul.addr %s418, 2
        %s420 = scalar_lea.vmem [#allocation8], %s419
        // Predicated region
        $region41: #{tpu_custom_call.1} parent=31 // pred_check
          %p421 = pneg %p128
        $region42: #{tpu_custom_call.1} parent=31 // pred_check_branch
          %423 = sbr.rel (%p421) target = $region44
        $region43: #{tpu_custom_call.1} parent=31 // pred_region
          %s424 = smul.u32 2, %s31
          %s426 = ssub.s32 64, 64
          %427 = vsyncadd %s412, %s426
          %s428 = smul.addr %s30, 4
          %s429 = sadd.s32 %s424, %s428
          %s430 = smul.addr %s429, 32
          %s431 = scalar_lea.hbm %s3, %s430
          %s433 = sshll.u32 %s415, 4
          %s434 = int_to_ptr.vmem [resolvable:$true] %s433
          %436 = dma.vmem_to_hbm [thread:$0]  %s434, 64, %s431, %s412
        $region44: #{tpu_custom_call.1} parent=31 // pred_fallthru
          _
        // Predicated region
        $region45: #{tpu_custom_call.1} parent=31 // pred_check
          %p437 = pneg %p156
        $region46: #{tpu_custom_call.1} parent=31 // pred_check_branch
          %439 = sbr.rel (%p437) target = $region48
        $region47: #{tpu_custom_call.1} parent=31 // pred_region
          %s440 = smul.u32 2, %s31
          %s442 = ssub.s32 32, 32
          %443 = vsyncadd %s417, %s442
          %s444 = smul.addr %s30, 4
          %s445 = sadd.s32 %s440, %s444
          %s446 = smul.addr %s445, 16
          %s447 = scalar_lea.hbm %s4, %s446
          %s449 = sshll.u32 %s420, 4
          %s450 = int_to_ptr.vmem [resolvable:$true] %s449
          %452 = dma.vmem_to_hbm [thread:$0]  %s450, 32, %s447, %s417
        $region48: #{tpu_custom_call.1} parent=31 // pred_fallthru
          _
      $region32: #{tpu_custom_call.1} parent=5 // pred_fallthru
        _
      %p453 = scmp.le.s32.totalorder 2, %s21
      // Predicated region
      $region49: #{tpu_custom_call.1} parent=5 // pred_check
        %p454 = pneg %p453
      $region50: #{tpu_custom_call.1} parent=5 // pred_check_branch
        %456 = sbr.rel (%p454) target = $region52
      $region51: #{tpu_custom_call.1} parent=5 // pred_region
        %s457 = ssub.s32 %s21, 2
        // Predicated region
        $region53: #{tpu_custom_call.1} parent=51 // pred_check
          %p458 = pneg %p134
        $region54: #{tpu_custom_call.1} parent=51 // pred_check_branch
          %460 = sbr.rel (%p458) target = $region56
        $region55: #{tpu_custom_call.1} parent=51 // pred_region
          %s461 = sand.u32 %s119, 1
          %s462 = scalar_lea.sflag [#allocation4], %s461
          %s463 = sand.u32 %s119, 1
          %s464 = smul.addr %s463, 4
          %s465 = scalar_lea.vmem [#allocation7], %s464
          %466 = dma.done %s462, 64
        $region56: #{tpu_custom_call.1} parent=51 // pred_fallthru
          _
        // Predicated region
        $region57: #{tpu_custom_call.1} parent=51 // pred_check
          %p467 = pneg %p162
        $region58: #{tpu_custom_call.1} parent=51 // pred_check_branch
          %469 = sbr.rel (%p467) target = $region60
        $region59: #{tpu_custom_call.1} parent=51 // pred_region
          %s470 = sand.u32 %s147, 1
          %s471 = scalar_lea.sflag [#allocation9], %s470
          %s472 = sand.u32 %s147, 1
          %s473 = smul.addr %s472, 2
          %s474 = scalar_lea.vmem [#allocation8], %s473
          %475 = dma.done %s471, 32
        $region60: #{tpu_custom_call.1} parent=51 // pred_fallthru
          _
      $region52: #{tpu_custom_call.1} parent=5 // pred_fallthru
        _
    $region6: #{tpu_custom_call.1} parent=1 // loop_footer
      %s25 = sadd.s32 1, %s21
    $region7: #{tpu_custom_call.1} parent=1 // loop_footer_branch
      %20 = sbr.rel target = $region3
    $region8: #{tpu_custom_call.1} parent=1 // loop_exit
      _
    %476 = vsyncpa [#allocation3], 1
    %s477 = scalar_lea.sflag [#allocation3], 1
    %478 = vsyncpa %s477, 1
    %479 = vsyncpa [#allocation4], 1
    %s480 = scalar_lea.sflag [#allocation4], 1
    %481 = vsyncpa %s480, 1
    %482 = vsyncpa [#allocation9], 1
    %s483 = scalar_lea.sflag [#allocation9], 1
    %484 = vsyncpa %s483, 1
    %485 = vsyncpa [#allocation5], 1
    %s486 = scalar_lea.sflag [#allocation5], 1
    %487 = vsyncpa %s486, 1

</llo_original>
